<compile_context>
chip_gen: v7x
topology: tpu7x:2x2x1
jax: 0.10.0
libtpu: 0.0.40
codegen_flags: <defaults>
</compile_context>

<pallas_src>
import functools

import numpy as np
import jax
import jax.numpy as jnp
from jax.experimental import pallas as pl
from jax.experimental.pallas import tpu as pltpu


# ----------------------------------------------------------------------------
# Common helpers
# ----------------------------------------------------------------------------

_VMEM_LIMIT = 32 * 1024 * 1024


def _cparams(ngrid):
    return pltpu.CompilerParams(
        dimension_semantics=("parallel",) * ngrid,
        vmem_limit_bytes=_VMEM_LIMIT)


def _row_tile(m):
    """Pick a row-tile (matmul M dim) that divides m and keeps MXU M >= 64."""
    for t in (256, 128, 64, 32, 16, 8):
        if m % t == 0:
            return t
    return m


def _im2col(x, kh_sz, kw_sz):
    """'same'-padded KHxKW patches, channel order (kh, kw, cin).

    Returns (B, H, W, KH*KW*C).  Pure data movement; XLA fuses pad + slices +
    concat (+ the bf16 cast applied by the caller) into one copy."""
    if kh_sz == 1 and kw_sz == 1:
        return x
    _, H, W, _ = x.shape
    ph, pw = kh_sz // 2, kw_sz // 2
    xp = jnp.pad(x, ((0, 0), (ph, ph), (pw, pw), (0, 0)))
    cols = [xp[:, kh:kh + H, kw:kw + W, :]
            for kh in range(kh_sz) for kw in range(kw_sz)]
    return jnp.concatenate(cols, axis=-1)


# ----------------------------------------------------------------------------
# Pallas kernels
# ----------------------------------------------------------------------------

def _conv_kernel(p_ref, w_ref, b_ref, o_ref, *, relu):
    """One im2col matmul with fused bias (+ReLU).
       p_ref: (1, mt, K) bf16, w_ref: (K, N) bf16, b_ref: (1, N) f32."""
    acc = jnp.dot(p_ref[0], w_ref[...], preferred_element_type=jnp.float32)
    acc = acc + b_ref[...]
    if relu:
        acc = jnp.maximum(acc, 0.0)
    o_ref[0] = acc.astype(o_ref.dtype)


def _gru_zr_kernel(ph_ref, px_ref, wh_ref, wx_ref, b_ref,
                   cz_ref, cr_ref, h_ref, z_ref, rh_ref, *, C):
    """Fused convz+convr (Cout = 2C) with sigmoid gates and r*h epilogue."""
    acc = jnp.dot(ph_ref[0], wh_ref[...], preferred_element_type=jnp.float32)
    acc = acc + jnp.dot(px_ref[0], wx_ref[...],
                        preferred_element_type=jnp.float32)
    acc = acc + b_ref[...]
    z = jax.nn.sigmoid(acc[:, :C] + cz_ref[0])
    r = jax.nn.sigmoid(acc[:, C:] + cr_ref[0])
    z_ref[0] = z.astype(z_ref.dtype)
    rh_ref[0] = (r * h_ref[0]).astype(rh_ref.dtype)


def _gru_q_kernel(ph_ref, px_ref, wh_ref, wx_ref, b_ref,
                  cq_ref, z_ref, h_ref, o_ref):
    """convq with tanh and h_new = (1-z)*h + z*q folded into the epilogue."""
    acc = jnp.dot(ph_ref[0], wh_ref[...], preferred_element_type=jnp.float32)
    acc = acc + jnp.dot(px_ref[0], wx_ref[...],
                        preferred_element_type=jnp.float32)
    acc = acc + b_ref[...]
    q = jnp.tanh(acc + cq_ref[0])
    z = z_ref[0]
    o_ref[0] = ((1.0 - z) * h_ref[0] + z * q).astype(o_ref.dtype)


def _pool_kernel(p_ref, o_ref, *, C, taps):
    """Stride-2 3x3 mean from pre-gathered taps: sum of `taps` lane-aligned
       channel groups, scaled by 1/taps (count_include_pad=True)."""
    p = p_ref[0]
    acc = p[:, 0:C].astype(jnp.float32)
    for t in range(1, taps):
        acc = acc + p[:, t * C:(t + 1) * C].astype(jnp.float32)
    o_ref[0] = (acc * (1.0 / taps)).astype(o_ref.dtype)


def _bmm_left_kernel(m_ref, x_ref, o_ref):
    """o[b] = m @ x[b] (used for the fused bilinear interpolation matmul)."""
    o_ref[0] = jnp.dot(m_ref[...], x_ref[0],
                       preferred_element_type=jnp.float32).astype(o_ref.dtype)


# ----------------------------------------------------------------------------
# pallas_call wrappers
# ----------------------------------------------------------------------------

def _matmul_bias_act(patches, w, b2, *, relu):
    """patches: (B, M, K) bf16, w: (K, N) bf16, b2: (1, N) f32 -> (B, M, N) f32."""
    B, M, K = patches.shape
    N = w.shape[1]
    mt = _row_tile(M)
    dmap = lambda bi, mi: (bi, mi, 0)
    smap = lambda bi, mi: (0, 0)
    ce = pl.CostEstimate(
        flops=2 * B * M * K * N,
        transcendentals=0,
        bytes_accessed=int(B * M * K * patches.dtype.itemsize
                           + K * N * w.dtype.itemsize + B * M * N * 4))
    return pl.pallas_call(
        functools.partial(_conv_kernel, relu=relu),
        out_shape=jax.ShapeDtypeStruct((B, M, N), jnp.float32),
        grid=(B, M // mt),
        in_specs=[pl.BlockSpec((1, mt, K), dmap),
                  pl.BlockSpec((K, N), smap),
                  pl.BlockSpec((1, N), smap)],
        out_specs=pl.BlockSpec((1, mt, N), dmap),
        compiler_params=_cparams(2),
        cost_estimate=ce,
    )(patches, w, b2)


def conv2d(x, w, b, *, relu=False):
    """nn.Conv2d(..., padding=K//2), stride 1, via im2col + single MXU matmul."""
    B, H, W, Cin = x.shape
    KH, KW, _, Cout = w.shape
    K = KH * KW * Cin
    patches = _im2col(x, KH, KW).astype(jnp.bfloat16).reshape(B, H * W, K)
    wf = w.reshape(K, Cout).astype(jnp.bfloat16)
    y = _matmul_bias_act(patches, wf, b.reshape(1, Cout), relu=relu)
    return y.reshape(B, H, W, Cout)


def pool2x(x):
    """F.avg_pool2d(x, 3, stride=2, padding=1), computed directly at stride 2."""
    B, H, W, C = x.shape
    Ho, Wo = (H - 1) // 2 + 1, (W - 1) // 2 + 1
    xp = jnp.pad(x, ((0, 0), (1, 1), (1, 1), (0, 0)))
    cols = [xp[:, kh:kh + 2 * Ho - 1:2, kw:kw + 2 * Wo - 1:2, :]
            for kh in range(3) for kw in range(3)]
    patches = jnp.concatenate(cols, axis=-1).reshape(B, Ho * Wo, 9 * C)
    M = Ho * Wo
    mt = _row_tile(M)
    dmap = lambda bi, mi: (bi, mi, 0)
    y = pl.pallas_call(
        functools.partial(_pool_kernel, C=C, taps=9),
        out_shape=jax.ShapeDtypeStruct((B, M, C), x.dtype),
        grid=(B, M // mt),
        in_specs=[pl.BlockSpec((1, mt, 9 * C), dmap)],
        out_specs=pl.BlockSpec((1, mt, C), dmap),
        compiler_params=_cparams(2),
    )(patches)
    return y.reshape(B, Ho, Wo, C)


def _bmm_left(m, x):
    """(P, Q) @ (B, Q, N) -> (B, P, N), row-tiled over P for megacore."""
    B, Q, N = x.shape
    P = m.shape[0]
    pt = _row_tile(P)
    ce = pl.CostEstimate(flops=2 * B * P * Q * N, transcendentals=0,
                         bytes_accessed=int(4 * (P * Q + B * Q * N + B * P * N)))
    return pl.pallas_call(
        _bmm_left_kernel,
        out_shape=jax.ShapeDtypeStruct((B, P, N), x.dtype),
        grid=(B, P // pt),
        in_specs=[pl.BlockSpec((pt, Q), lambda bi, mi: (mi, 0)),
                  pl.BlockSpec((1, Q, N), lambda bi, mi: (bi, 0, 0))],
        out_specs=pl.BlockSpec((1, pt, N), lambda bi, mi: (bi, mi, 0)),
        compiler_params=_cparams(2),
        cost_estimate=ce,
    )(m, x)


def _interp_matrix(n_out, n_in):
    """1-D bilinear (align_corners=True) interpolation matrix (n_out, n_in)."""
    if n_in == 1:
        return np.ones((n_out, 1), np.float32)
    if n_out == 1:
        src = np.zeros((1,), np.float64)
    else:
        src = np.arange(n_out, dtype=np.float64) * (n_in - 1) / (n_out - 1)
    lo = np.clip(np.floor(src).astype(np.int64), 0, n_in - 2)
    frac = src - lo
    A = np.zeros((n_out, n_in), np.float64)
    A[np.arange(n_out), lo] += 1.0 - frac
    A[np.arange(n_out), lo + 1] += frac
    return A.astype(np.float32)


def interp_bilinear(x, hout, wout):
    """F.interpolate(x, (hout, wout), mode='bilinear', align_corners=True)
       as ONE matmul: kron(A_h, A_w) @ x_flat (separable weights pre-combined)."""
    B, Hin, Win, C = x.shape
    A = _interp_matrix(hout, Hin)
    Bw = _interp_matrix(wout, Win)
    M = jnp.asarray(np.kron(A, Bw), jnp.float32)       # (hout*wout, Hin*Win)
    y = _bmm_left(M, x.reshape(B, Hin * Win, C))       # (B, hout*wout, C)
    return y.reshape(B, hout, wout, C)


# ----------------------------------------------------------------------------
# ConvGRU: two fused pallas_calls per GRU
# ----------------------------------------------------------------------------

def conv_gru(p, h, cz, cr, cq, x_list):
    B, H, W, C = h.shape
    x = x_list[0] if len(x_list) == 1 else jnp.concatenate(x_list, axis=-1)
    Cx = x.shape[-1]
    M = H * W
    Kh, Kx = 9 * C, 9 * Cx

    # im2col patches for the hidden state and the (shared) x input, bf16.
    ph = _im2col(h, 3, 3).astype(jnp.bfloat16).reshape(B, M, Kh)
    px = _im2col(x, 3, 3).astype(jnp.bfloat16).reshape(B, M, Kx)

    def _split(w):       # (3,3,C+Cx,Cout) -> h-part (Kh,Cout), x-part (Kx,Cout)
        n = w.shape[-1]
        return (w[:, :, :C, :].reshape(Kh, n).astype(jnp.bfloat16),
                w[:, :, C:, :].reshape(Kx, n).astype(jnp.bfloat16))

    wz_h, wz_x = _split(p['convz']['w'])
    wr_h, wr_x = _split(p['convr']['w'])
    wq_h, wq_x = _split(p['convq']['w'])
    wzr_h = jnp.concatenate([wz_h, wr_h], axis=1)        # (Kh, 2C)
    wzr_x = jnp.concatenate([wz_x, wr_x], axis=1)        # (Kx, 2C)
    bzr = jnp.concatenate([p['convz']['b'], p['convr']['b']]).reshape(1, 2 * C)
    bq = p['convq']['b'].reshape(1, C)

    cz2, cr2, cq2, h2 = (t.reshape(B, M, C) for t in (cz, cr, cq, h))

    mt = _row_tile(M)
    grid = (B, M // mt)
    dmap = lambda bi, mi: (bi, mi, 0)
    smap = lambda bi, mi: (0, 0)
    gate_spec = pl.BlockSpec((1, mt, C), dmap)

    ce_zr = pl.CostEstimate(
        flops=2 * B * M * (Kh + Kx) * 2 * C,
        transcendentals=2 * B * M * C,
        bytes_accessed=int(B * M * (Kh + Kx) * 2 + (Kh + Kx) * 2 * C * 2
                           + 5 * B * M * C * 4))
    z, rh = pl.pallas_call(
        functools.partial(_gru_zr_kernel, C=C),
        out_shape=(jax.ShapeDtypeStruct((B, M, C), h.dtype),
                   jax.ShapeDtypeStruct((B, M, C), h.dtype)),
        grid=grid,
        in_specs=[pl.BlockSpec((1, mt, Kh), dmap),
                  pl.BlockSpec((1, mt, Kx), dmap),
                  pl.BlockSpec((Kh, 2 * C), smap),
                  pl.BlockSpec((Kx, 2 * C), smap),
                  pl.BlockSpec((1, 2 * C), smap),
                  gate_spec, gate_spec, gate_spec],
        out_specs=(gate_spec, gate_spec),
        compiler_params=_cparams(2),
        cost_estimate=ce_zr,
    )(ph, px, wzr_h, wzr_x, bzr, cz2, cr2, h2)

    # q conv reuses px; only r*h needs a fresh im2col.
    prh = _im2col(rh.reshape(B, H, W, C), 3, 3).astype(jnp.bfloat16)
    prh = prh.reshape(B, M, Kh)

    ce_q = pl.CostEstimate(
        flops=2 * B * M * (Kh + Kx) * C,
        transcendentals=B * M * C,
        bytes_accessed=int(B * M * (Kh + Kx) * 2 + (Kh + Kx) * C * 2
                           + 4 * B * M * C * 4))
    h_new = pl.pallas_call(
        _gru_q_kernel,
        out_shape=jax.ShapeDtypeStruct((B, M, C), h.dtype),
        grid=grid,
        in_specs=[pl.BlockSpec((1, mt, Kh), dmap),
                  pl.BlockSpec((1, mt, Kx), dmap),
                  pl.BlockSpec((Kh, C), smap),
                  pl.BlockSpec((Kx, C), smap),
                  pl.BlockSpec((1, C), smap),
                  gate_spec, gate_spec, gate_spec],
        out_specs=gate_spec,
        compiler_params=_cparams(2),
        cost_estimate=ce_q,
    )(prh, px, wq_h, wq_x, bq, cq2, z, h2)

    return h_new.reshape(B, H, W, C)


# ----------------------------------------------------------------------------
# Module forward (glue in plain JAX, compute in Pallas)
# ----------------------------------------------------------------------------

def basic_motion_encoder(p, disp, corr):
    cor = conv2d(corr, p['convc1']['w'], p['convc1']['b'], relu=True)
    cor = conv2d(cor, p['convc2']['w'], p['convc2']['b'], relu=True)
    dis = conv2d(disp, p['convd1']['w'], p['convd1']['b'], relu=True)
    dis = conv2d(dis, p['convd2']['w'], p['convd2']['b'], relu=True)
    cor_dis = jnp.concatenate([cor, dis], axis=-1)
    out = conv2d(cor_dis, p['conv']['w'], p['conv']['b'], relu=True)
    return jnp.concatenate([out, disp], axis=-1)


def disp_head(p, x):
    h = conv2d(x, p['conv1']['w'], p['conv1']['b'], relu=True)
    return conv2d(h, p['conv2']['w'], p['conv2']['b'])


def mask_head(p, x):
    h = conv2d(x, p['conv1']['w'], p['conv1']['b'], relu=True)
    return conv2d(h, p['conv2']['w'], p['conv2']['b'])


def basic_multi_update_block(params, net, inp, corr=None, disp=None, *,
                             n_gru_layers=3, iter08=True, iter16=True,
                             iter32=True, update=True):
    net = list(net)
    if iter32:
        net[2] = conv_gru(params['gru32'], net[2], *inp[2], [pool2x(net[1])])
    if iter16:
        if n_gru_layers > 2:
            net[1] = conv_gru(params['gru16'], net[1], *inp[1],
                              [pool2x(net[0]),
                               interp_bilinear(net[2], net[1].shape[1],
                                               net[1].shape[2])])
        else:
            net[1] = conv_gru(params['gru16'], net[1], *inp[1], [pool2x(net[0])])
    if iter08:
        motion_features = basic_motion_encoder(params['encoder'], disp, corr)
        if n_gru_layers > 1:
            net[0] = conv_gru(params['gru08'], net[0], *inp[0],
                              [motion_features,
                               interp_bilinear(net[1], net[0].shape[1],
                                               net[0].shape[2])])
        else:
            net[0] = conv_gru(params['gru08'], net[0], *inp[0],
                              [motion_features])
    if not update:
        return net
    delta_disp = disp_head(params['disp_head'], net[0])
    mask = 0.25 * mask_head(params['mask'], net[0])
    return net, mask, delta_disp


# ----------------------------------------------------------------------------
# Deterministic parameter init (PyTorch-like uniform; NO checkpoint loading)
# ----------------------------------------------------------------------------

def _conv_init(key, kh, kw, cin, cout):
    kw_key, kb_key = jax.random.split(key)
    bound = 1.0 / np.sqrt(kh * kw * cin)
    w = jax.random.uniform(kw_key, (kh, kw, cin, cout), jnp.float32, -bound, bound)
    b = jax.random.uniform(kb_key, (cout,), jnp.float32, -bound, bound)
    return {'w': w, 'b': b}


def init_params(key, cor_planes, hidden_dims, n_downsample, n_gru_layers):
    ks = iter(jax.random.split(key, 32))

    def cp(kh, kw, cin, cout):
        return _conv_init(next(ks), kh, kw, cin, cout)

    enc_out = 128
    gru08_in = enc_out + hidden_dims[1] * (n_gru_layers > 1)
    gru16_in = hidden_dims[0] * (n_gru_layers == 3) + hidden_dims[2]
    gru32_in = hidden_dims[1]
    factor = 2 ** n_downsample
    return {
        'encoder': {
            'convc1': cp(1, 1, cor_planes, 64),
            'convc2': cp(3, 3, 64, 64),
            'convd1': cp(7, 7, 1, 64),
            'convd2': cp(3, 3, 64, 64),
            'conv':   cp(3, 3, 128, enc_out - 1),
        },
        'gru08': {n: cp(3, 3, hidden_dims[2] + gru08_in, hidden_dims[2])
                  for n in ('convz', 'convr', 'convq')},
        'gru16': {n: cp(3, 3, hidden_dims[1] + gru16_in, hidden_dims[1])
                  for n in ('convz', 'convr', 'convq')},
        'gru32': {n: cp(3, 3, hidden_dims[0] + gru32_in, hidden_dims[0])
                  for n in ('convz', 'convr', 'convq')},
        'disp_head': {'conv1': cp(3, 3, hidden_dims[2], 256),
                      'conv2': cp(3, 3, 256, 1)},
        'mask': {'conv1': cp(3, 3, hidden_dims[2], 256),
                 'conv2': cp(1, 1, 256, factor ** 2 * 9)},
    }


# ----------------------------------------------------------------------------
# Demo
# ----------------------------------------------------------------------------

if __name__ == "__main__":
    # args
    corr_levels, corr_radius = 4, 4
    n_gru_layers, n_downsample = 3, 2
    cor_planes = corr_levels * (2 * corr_radius + 1)       # 36
    hidden_dims = [128, 128, 128]

    # 1/8, 1/16, 1/32 resolution pyramid (spatial kept multiples of 8)
    B = 1
    sizes = [(32, 32), (16, 16), (8, 8)]

    root = jax.random.PRNGKey(0)
    pkey, dkey = jax.random.split(root)
    params = init_params(pkey, cor_planes, hidden_dims, n_downsample, n_gru_layers)

    dks = iter(jax.random.split(dkey, 16))
    net = [jnp.tanh(jax.random.normal(next(dks), (B, h, w, hd), jnp.float32))
           for (h, w), hd in zip(sizes, hidden_dims)]
    inp = [[jax.random.normal(next(dks), (B, h, w, hd), jnp.float32)
            for _ in range(3)]
           for (h, w), hd in zip(sizes, hidden_dims)]
    corr = jax.random.normal(next(dks), (B, sizes[0][0], sizes[0][1], cor_planes),
                             jnp.float32)
    disp = 0.1 * jax.random.normal(next(dks), (B, sizes[0][0], sizes[0][1], 1),
                                   jnp.float32)

    new_net, mask, delta_disp = basic_multi_update_block(
        params, net, inp, corr=corr, disp=disp,
        n_gru_layers=n_gru_layers,
        iter08=True, iter16=True, iter32=True, update=True)

    jax.block_until_ready((new_net, mask, delta_disp))

    # light sanity checks on shapes / finiteness
    assert new_net[0].shape == (B, 32, 32, 128)
    assert new_net[1].shape == (B, 16, 16, 128)
    assert new_net[2].shape == (B, 8, 8, 128)
    assert mask.shape == (B, 32, 32, (2 ** n_downsample) ** 2 * 9)
    assert delta_disp.shape == (B, 32, 32, 1)
    assert bool(jnp.all(jnp.isfinite(mask))) and bool(jnp.all(jnp.isfinite(delta_disp)))
    assert all(bool(jnp.all(jnp.isfinite(n))) for n in new_net)

    print("KERNEL_OK")
</pallas_src>

<mosaic_0001>
module attributes {stable_mosaic.version = 11 : i64} {
  func.func @_pool_kernel(%arg0: i32, %arg1: i32, %arg2: memref<1x64x1152xf32, #tpu.memory_space<vmem>>, %arg3: memref<1x64x128xf32, #tpu.memory_space<vmem>>) attributes {dimension_semantics = [#tpu.dimension_semantics<parallel>, #tpu.dimension_semantics<parallel>], iteration_bounds = array<i64: 1, 1>, scalar_prefetch = 0 : i64, scratch_operands = 0 : i64, tpu.core_type = #tpu.core_type<tc>, window_params = [{transform_indices = @transform_0, window_bounds = array<i64: 1, 64, 1152>}, {transform_indices = @transform_1, window_bounds = array<i64: 1, 64, 128>}]} {
    %c0 = arith.constant 0 : index
    %c0_0 = arith.constant 0 : index
    %c0_1 = arith.constant 0 : index
    %0 = vector.load %arg2[%c0, %c0_0, %c0_1] : memref<1x64x1152xf32, #tpu.memory_space<vmem>>, vector<1x64x1152xf32>
    %1 = vector.shape_cast %0 : vector<1x64x1152xf32> to vector<64x1152xf32>
    %2 = vector.extract_strided_slice %1 {offsets = [0, 0], sizes = [64, 128], strides = [1, 1]} : vector<64x1152xf32> to vector<64x128xf32>
    %3 = vector.extract_strided_slice %1 {offsets = [0, 128], sizes = [64, 128], strides = [1, 1]} : vector<64x1152xf32> to vector<64x128xf32>
    %4 = arith.addf %2, %3 : vector<64x128xf32>
    %5 = vector.extract_strided_slice %1 {offsets = [0, 256], sizes = [64, 128], strides = [1, 1]} : vector<64x1152xf32> to vector<64x128xf32>
    %6 = arith.addf %4, %5 : vector<64x128xf32>
    %7 = vector.extract_strided_slice %1 {offsets = [0, 384], sizes = [64, 128], strides = [1, 1]} : vector<64x1152xf32> to vector<64x128xf32>
    %8 = arith.addf %6, %7 : vector<64x128xf32>
    %9 = vector.extract_strided_slice %1 {offsets = [0, 512], sizes = [64, 128], strides = [1, 1]} : vector<64x1152xf32> to vector<64x128xf32>
    %10 = arith.addf %8, %9 : vector<64x128xf32>
    %11 = vector.extract_strided_slice %1 {offsets = [0, 640], sizes = [64, 128], strides = [1, 1]} : vector<64x1152xf32> to vector<64x128xf32>
    %12 = arith.addf %10, %11 : vector<64x128xf32>
    %13 = vector.extract_strided_slice %1 {offsets = [0, 768], sizes = [64, 128], strides = [1, 1]} : vector<64x1152xf32> to vector<64x128xf32>
    %14 = arith.addf %12, %13 : vector<64x128xf32>
    %15 = vector.extract_strided_slice %1 {offsets = [0, 896], sizes = [64, 128], strides = [1, 1]} : vector<64x1152xf32> to vector<64x128xf32>
    %16 = arith.addf %14, %15 : vector<64x128xf32>
    %17 = vector.extract_strided_slice %1 {offsets = [0, 1024], sizes = [64, 128], strides = [1, 1]} : vector<64x1152xf32> to vector<64x128xf32>
    %18 = arith.addf %16, %17 : vector<64x128xf32>
    %cst = arith.constant 0.111111112 : f32
    %19 = vector.broadcast %cst : f32 to vector<64x128xf32>
    %20 = arith.mulf %18, %19 : vector<64x128xf32>
    %c0_2 = arith.constant 0 : index
    %c0_3 = arith.constant 0 : index
    %c0_4 = arith.constant 0 : index
    %21 = vector.load %arg3[%c0_2, %c0_3, %c0_4] : memref<1x64x128xf32, #tpu.memory_space<vmem>>, vector<1x64x128xf32>
    %22 = vector.shape_cast %21 : vector<1x64x128xf32> to vector<64x128xf32>
    %23 = vector.shape_cast %20 : vector<64x128xf32> to vector<1x64x128xf32>
    tpu.vector_store %arg3[%c0_2, %c0_3, %c0_4], %23 {strides = array<i32>} : memref<1x64x128xf32, #tpu.memory_space<vmem>>, vector<1x64x128xf32>,
    return
  }
  func.func @transform_0(%arg0: i32, %arg1: i32) -> (i32, i32, i32) {
    %c0_i32 = arith.constant 0 : i32
    %c0_i32_0 = arith.constant 0 : i32
    return %arg0, %arg1, %c0_i32 : i32, i32, i32
  }
  func.func @transform_1(%arg0: i32, %arg1: i32) -> (i32, i32, i32) {
    %c0_i32 = arith.constant 0 : i32
    %c0_i32_0 = arith.constant 0 : i32
    return %arg0, %arg1, %c0_i32 : i32, i32, i32
  }
}

</mosaic_0001>

<llo_original>
// kernel: tpu_custom_call.1
$region0: #{tpu_custom_call.1}
  #allocation0 [shape = 'u32[]', space=smem, size = 0x4, offset = 0x4, fixed_abs, tag = 'smem constant byte address 0x4 - core index']
  #allocation1 [shape = 'u32[144,128]{1,0:T(1,128)}', space=vmem, size = 0x12000, scoped, tag = 'internal scratch']
  %s0 = inlined_call_operand.hbm [shape: f32[1,64,1152], index: 0, kind: input, shape index: {}]
  %s1 = inlined_call_operand.hbm [shape: f32[1,64,128], index: 1, kind: output, shape index: {}]
  %s2 = sld [smem:[#allocation0]]
  $region18: #{tpu_custom_call.1} parent=0
    _
  %s4 = ssub.s32 1, %s2
  %s5 = scalar_select 0, %s4, %s2
  $region1: #{tpu_custom_call.1} parent=0
    #allocation2 [shape = 'u8[294912]{0}', space=vmem, size = 0x48000, scoped, tag = 'input window, operand 0, single buffered']
    #allocation3 [shape = 's32[1]{0}', space=sflag, size = 0x4, scoped, tag = 'scoped memory for tpu_custom_call.1']
    #allocation4 [shape = 's32[1]{0}', space=sflag, size = 0x4, scoped, tag = 'scoped memory for tpu_custom_call.1']
    #allocation5 [shape = 'u8[32768]{0}', space=vmem, size = 0x8000, scoped, tag = 'output window, operand 0, single buffered']
    %6 = vsyncpa [#allocation3], 0
    %7 = vsyncpa [#allocation4], 0
    // Predicated region
    $region2: #{tpu_custom_call.1} parent=1 // pred_check
      _
    $region3: #{tpu_custom_call.1} parent=1 // pred_check_branch
      %9 = sbr.rel (0) target = $region5
    $region4: #{tpu_custom_call.1} parent=1 // pred_region
      %s11 = ssub.s32 9216, 9216
      %12 = vsyncadd [#allocation3], %s11
      %s13 = sshll.u32 [#allocation2], 4
      %s14 = int_to_ptr.vmem [resolvable:$true] %s13
      %19 = dma.hbm_to_vmem [thread:$0]  %s0, 9216, %s14, [#allocation3], 1152, 1152, 72
    $region5: #{tpu_custom_call.1} parent=1 // pred_fallthru
      _
    // Predicated region
    $region6: #{tpu_custom_call.1} parent=1 // pred_check
      _
    $region7: #{tpu_custom_call.1} parent=1 // pred_check_branch
      %21 = sbr.rel (0) target = $region9
    $region8: #{tpu_custom_call.1} parent=1 // pred_region
      %22 = dma.done [#allocation3], 9216
    $region9: #{tpu_custom_call.1} parent=1 // pred_fallthru
      _
    %v23 = vld [vmem:[#allocation2] sm:$0xff]
    %v24 = vld [vmem:[#allocation2 + $0x8] sm:$0xff]
    %v25 = vld [vmem:[#allocation2 + $0x10] sm:$0xff]
    %v26 = vld [vmem:[#allocation2 + $0x18] sm:$0xff]
    %v27 = vld [vmem:[#allocation2 + $0x20] sm:$0xff]
    %v28 = vld [vmem:[#allocation2 + $0x28] sm:$0xff]
    %v29 = vld [vmem:[#allocation2 + $0x30] sm:$0xff]
    %v30 = vld [vmem:[#allocation2 + $0x38] sm:$0xff]
    %v31 = vld [vmem:[#allocation2 + $0x40] sm:$0xff]
    %v32 = vld [vmem:[#allocation2 + $0x48] sm:$0xff]
    %v33 = vld [vmem:[#allocation2 + $0x50] sm:$0xff]
    %v34 = vld [vmem:[#allocation2 + $0x58] sm:$0xff]
    %v35 = vld [vmem:[#allocation2 + $0x60] sm:$0xff]
    %v36 = vld [vmem:[#allocation2 + $0x68] sm:$0xff]
    %v37 = vld [vmem:[#allocation2 + $0x70] sm:$0xff]
    %v38 = vld [vmem:[#allocation2 + $0x78] sm:$0xff]
    %v39 = vld [vmem:[#allocation2 + $0x80] sm:$0xff]
    %v40 = vld [vmem:[#allocation2 + $0x88] sm:$0xff]
    %v41 = vld [vmem:[#allocation2 + $0x90] sm:$0xff]
    %v42 = vld [vmem:[#allocation2 + $0x98] sm:$0xff]
    %v43 = vld [vmem:[#allocation2 + $0xa0] sm:$0xff]
    %v44 = vld [vmem:[#allocation2 + $0xa8] sm:$0xff]
    %v45 = vld [vmem:[#allocation2 + $0xb0] sm:$0xff]
    %v46 = vld [vmem:[#allocation2 + $0xb8] sm:$0xff]
    %v47 = vld [vmem:[#allocation2 + $0xc0] sm:$0xff]
    %v48 = vld [vmem:[#allocation2 + $0xc8] sm:$0xff]
    %v49 = vld [vmem:[#allocation2 + $0xd0] sm:$0xff]
    %v50 = vld [vmem:[#allocation2 + $0xd8] sm:$0xff]
    %v51 = vld [vmem:[#allocation2 + $0xe0] sm:$0xff]
    %v52 = vld [vmem:[#allocation2 + $0xe8] sm:$0xff]
    %v53 = vld [vmem:[#allocation2 + $0xf0] sm:$0xff]
    %v54 = vld [vmem:[#allocation2 + $0xf8] sm:$0xff]
    %v55 = vld [vmem:[#allocation2 + $0x100] sm:$0xff]
    %v56 = vld [vmem:[#allocation2 + $0x108] sm:$0xff]
    %v57 = vld [vmem:[#allocation2 + $0x110] sm:$0xff]
    %v58 = vld [vmem:[#allocation2 + $0x118] sm:$0xff]
    %v59 = vld [vmem:[#allocation2 + $0x120] sm:$0xff]
    %v60 = vld [vmem:[#allocation2 + $0x128] sm:$0xff]
    %v61 = vld [vmem:[#allocation2 + $0x130] sm:$0xff]
    %v62 = vld [vmem:[#allocation2 + $0x138] sm:$0xff]
    %v63 = vld [vmem:[#allocation2 + $0x140] sm:$0xff]
    %v64 = vld [vmem:[#allocation2 + $0x148] sm:$0xff]
    %v65 = vld [vmem:[#allocation2 + $0x150] sm:$0xff]
    %v66 = vld [vmem:[#allocation2 + $0x158] sm:$0xff]
    %v67 = vld [vmem:[#allocation2 + $0x160] sm:$0xff]
    %v68 = vld [vmem:[#allocation2 + $0x168] sm:$0xff]
    %v69 = vld [vmem:[#allocation2 + $0x170] sm:$0xff]
    %v70 = vld [vmem:[#allocation2 + $0x178] sm:$0xff]
    %v71 = vld [vmem:[#allocation2 + $0x180] sm:$0xff]
    %v72 = vld [vmem:[#allocation2 + $0x188] sm:$0xff]
    %v73 = vld [vmem:[#allocation2 + $0x190] sm:$0xff]
    %v74 = vld [vmem:[#allocation2 + $0x198] sm:$0xff]
    %v75 = vld [vmem:[#allocation2 + $0x1a0] sm:$0xff]
    %v76 = vld [vmem:[#allocation2 + $0x1a8] sm:$0xff]
    %v77 = vld [vmem:[#allocation2 + $0x1b0] sm:$0xff]
    %v78 = vld [vmem:[#allocation2 + $0x1b8] sm:$0xff]
    %v79 = vld [vmem:[#allocation2 + $0x1c0] sm:$0xff]
    %v80 = vld [vmem:[#allocation2 + $0x1c8] sm:$0xff]
    %v81 = vld [vmem:[#allocation2 + $0x1d0] sm:$0xff]
    %v82 = vld [vmem:[#allocation2 + $0x1d8] sm:$0xff]
    %v83 = vld [vmem:[#allocation2 + $0x1e0] sm:$0xff]
    %v84 = vld [vmem:[#allocation2 + $0x1e8] sm:$0xff]
    %v85 = vld [vmem:[#allocation2 + $0x1f0] sm:$0xff]
    %v86 = vld [vmem:[#allocation2 + $0x1f8] sm:$0xff]
    %v87 = vld [vmem:[#allocation2 + $0x200] sm:$0xff]
    %v88 = vld [vmem:[#allocation2 + $0x208] sm:$0xff]
    %v89 = vld [vmem:[#allocation2 + $0x210] sm:$0xff]
    %v90 = vld [vmem:[#allocation2 + $0x218] sm:$0xff]
    %v91 = vld [vmem:[#allocation2 + $0x220] sm:$0xff]
    %v92 = vld [vmem:[#allocation2 + $0x228] sm:$0xff]
    %v93 = vld [vmem:[#allocation2 + $0x230] sm:$0xff]
    %v94 = vld [vmem:[#allocation2 + $0x238] sm:$0xff]
    %v95 = vadd.f32 %v23, %v24
    %v96 = vadd.f32 %v32, %v33
    %v97 = vadd.f32 %v41, %v42
    %v98 = vadd.f32 %v50, %v51
    %v99 = vadd.f32 %v59, %v60
    %v100 = vadd.f32 %v68, %v69
    %v101 = vadd.f32 %v77, %v78
    %v102 = vadd.f32 %v86, %v87
    %v103 = vadd.f32 %v95, %v25
    %v104 = vadd.f32 %v96, %v34
    %v105 = vadd.f32 %v97, %v43
    %v106 = vadd.f32 %v98, %v52
    %v107 = vadd.f32 %v99, %v61
    %v108 = vadd.f32 %v100, %v70
    %v109 = vadd.f32 %v101, %v79
    %v110 = vadd.f32 %v102, %v88
    %v111 = vadd.f32 %v103, %v26
    %v112 = vadd.f32 %v104, %v35
    %v113 = vadd.f32 %v105, %v44
    %v114 = vadd.f32 %v106, %v53
    %v115 = vadd.f32 %v107, %v62
    %v116 = vadd.f32 %v108, %v71
    %v117 = vadd.f32 %v109, %v80
    %v118 = vadd.f32 %v110, %v89
    %v119 = vadd.f32 %v111, %v27
    %v120 = vadd.f32 %v112, %v36
    %v121 = vadd.f32 %v113, %v45
    %v122 = vadd.f32 %v114, %v54
    %v123 = vadd.f32 %v115, %v63
    %v124 = vadd.f32 %v116, %v72
    %v125 = vadd.f32 %v117, %v81
    %v126 = vadd.f32 %v118, %v90
    %v127 = vadd.f32 %v119, %v28
    %v128 = vadd.f32 %v120, %v37
    %v129 = vadd.f32 %v121, %v46
    %v130 = vadd.f32 %v122, %v55
    %v131 = vadd.f32 %v123, %v64
    %v132 = vadd.f32 %v124, %v73
    %v133 = vadd.f32 %v125, %v82
    %v134 = vadd.f32 %v126, %v91
    %v135 = vadd.f32 %v127, %v29
    %v136 = vadd.f32 %v128, %v38
    %v137 = vadd.f32 %v129, %v47
    %v138 = vadd.f32 %v130, %v56
    %v139 = vadd.f32 %v131, %v65
    %v140 = vadd.f32 %v132, %v74
    %v141 = vadd.f32 %v133, %v83
    %v142 = vadd.f32 %v134, %v92
    %v143 = vadd.f32 %v135, %v30
    %v144 = vadd.f32 %v136, %v39
    %v145 = vadd.f32 %v137, %v48
    %v146 = vadd.f32 %v138, %v57
    %v147 = vadd.f32 %v139, %v66
    %v148 = vadd.f32 %v140, %v75
    %v149 = vadd.f32 %v141, %v84
    %v150 = vadd.f32 %v142, %v93
    %v151 = vadd.f32 %v143, %v31
    %v152 = vadd.f32 %v144, %v40
    %v153 = vadd.f32 %v145, %v49
    %v154 = vadd.f32 %v146, %v58
    %v155 = vadd.f32 %v147, %v67
    %v156 = vadd.f32 %v148, %v76
    %v157 = vadd.f32 %v149, %v85
    %v158 = vadd.f32 %v150, %v94
    %v159 = vmul.f32 %v151, 0.11111111
    %v160 = vmul.f32 %v152, 0.11111111
    %v161 = vmul.f32 %v153, 0.11111111
    %v162 = vmul.f32 %v154, 0.11111111
    %v163 = vmul.f32 %v155, 0.11111111
    %v164 = vmul.f32 %v156, 0.11111111
    %v165 = vmul.f32 %v157, 0.11111111
    %v166 = vmul.f32 %v158, 0.11111111
    %167 = vst [vmem:[#allocation5] sm:$0xff] %v159
    %168 = vst [vmem:[#allocation5 + $0x8] sm:$0xff] %v160
    %169 = vst [vmem:[#allocation5 + $0x10] sm:$0xff] %v161
    %170 = vst [vmem:[#allocation5 + $0x18] sm:$0xff] %v162
    %171 = vst [vmem:[#allocation5 + $0x20] sm:$0xff] %v163
    %172 = vst [vmem:[#allocation5 + $0x28] sm:$0xff] %v164
    %173 = vst [vmem:[#allocation5 + $0x30] sm:$0xff] %v165
    %174 = vst [vmem:[#allocation5 + $0x38] sm:$0xff] %v166
    // Predicated region
    $region10: #{tpu_custom_call.1} parent=1 // pred_check
      _
    $region11: #{tpu_custom_call.1} parent=1 // pred_check_branch
      %176 = sbr.rel (0) target = $region13
    $region12: #{tpu_custom_call.1} parent=1 // pred_region
      %s178 = ssub.s32 1024, 1024
      %179 = vsyncadd [#allocation4], %s178
      %s180 = sshll.u32 [#allocation5], 4
      %s181 = int_to_ptr.vmem [resolvable:$true] %s180
      %186 = dma.vmem_to_hbm [thread:$0]  %s181, 1024, %s1, [#allocation4], 128, 128, 8
    $region13: #{tpu_custom_call.1} parent=1 // pred_fallthru
      _
    // Predicated region
    $region14: #{tpu_custom_call.1} parent=1 // pred_check
      _
    $region15: #{tpu_custom_call.1} parent=1 // pred_check_branch
      %188 = sbr.rel (0) target = $region17
    $region16: #{tpu_custom_call.1} parent=1 // pred_region
      %189 = dma.done [#allocation4], 1024
    $region17: #{tpu_custom_call.1} parent=1 // pred_fallthru
      _
    %190 = vsyncpa [#allocation3], 1
    %191 = vsyncpa [#allocation4], 1

</llo_original>
